<compile_context>
chip_gen: v5e
topology: v5e:2x2
jax: 0.10.0
libtpu: 0.0.40
codegen_flags: <defaults>
</compile_context>

<pallas_src>
import functools

import jax
import jax.numpy as jnp
from jax.experimental import pallas as pl
from jax.experimental.pallas import tpu as pltpu


def _round_up(x, m):
    return ((x + m - 1) // m) * m


def _fc_kernel(x_ref, w_ref, b_ref, o_ref):
    # x_ref: (TB, F) bf16   w_ref: (C_pad, F) bf16   b_ref: (1, C_pad) f32
    # o_ref: (TB, C_pad) f32
    # Contract the last dim of both operands: (TB, F) x (C_pad, F) -> (TB, C_pad).
    acc = jax.lax.dot_general(
        x_ref[...], w_ref[...],
        dimension_numbers=(((1,), (1,)), ((), ())),
        preferred_element_type=jnp.float32,
    )
    o_ref[...] = acc + b_ref[...]


@functools.partial(jax.jit, static_argnames=("tile_b",))
def net_forward(x_nchw, fc_weight, fc_bias, *, tile_b=256):
    """Equivalent of Net.forward for model_name='mocov1' (classifier head only).

    Args:
      x_nchw:    (B, 512, 1, 1) float32 -- encoder output (backbone not translated).
      fc_weight: (num_class, 512) float32 -- PyTorch nn.Linear weight layout (kept as-is).
      fc_bias:   (num_class,) float32.

    Returns:
      (B, num_class) float32 logits.
    """
    B = x_nchw.shape[0]
    # torch.flatten(x, start_dim=1)
    feature = x_nchw.reshape(B, -1)                     # (B, F)
    F = feature.shape[1]
    C = fc_weight.shape[0]

    # Lane-dense output: pad class dim to a multiple of 128.
    C_pad = _round_up(C, 128)
    # Batch tile: multiple of 8 (sublane); cap at tile_b for pipelining at large B.
    TB = min(tile_b, _round_up(B, 8))
    B_pad = _round_up(B, TB)

    # bf16 activations/weights, f32 accumulate + f32 bias.
    feat = feature.astype(jnp.bfloat16)
    if B_pad != B:
        feat = jnp.pad(feat, ((0, B_pad - B), (0, 0)))

    w = fc_weight.astype(jnp.bfloat16)                  # stays (C, F): lane dim = F = 512
    if C_pad != C:
        w = jnp.pad(w, ((0, C_pad - C), (0, 0)))

    b = fc_bias.astype(jnp.float32).reshape(1, C)
    if C_pad != C:
        b = jnp.pad(b, ((0, 0), (0, C_pad - C)))

    out = pl.pallas_call(
        _fc_kernel,
        out_shape=jax.ShapeDtypeStruct((B_pad, C_pad), jnp.float32),
        grid=(B_pad // TB,),
        in_specs=[
            pl.BlockSpec((TB, F), lambda i: (i, 0)),         # feature tiles (pipelined)
            pl.BlockSpec((C_pad, F), lambda i: (0, 0)),      # full weight, resident
            pl.BlockSpec((1, C_pad), lambda i: (0, 0)),      # full bias, resident
        ],
        out_specs=pl.BlockSpec((TB, C_pad), lambda i: (i, 0)),
        compiler_params=pltpu.CompilerParams(
            dimension_semantics=("parallel",)),              # megacore split on v7x
    )(feat, w, b)

    # Strip batch / class padding.
    return out[:B, :C]


if __name__ == "__main__":
    key = jax.random.PRNGKey(0)
    k_x, k_w, k_b = jax.random.split(key, 3)

    B = 8            # batch
    FEAT = 512       # mocov1 encoder feature dim
    NUM_CLASS = 10

    # Encoder output stand-in (NCHW, spatially pooled to 1x1 like a ResNet head).
    x = jax.random.normal(k_x, (B, FEAT, 1, 1), dtype=jnp.float32)

    # Deterministic fc parameters (shapes per nn.Linear(512, num_class, bias=True)).
    fc_weight = jax.random.normal(k_w, (NUM_CLASS, FEAT), dtype=jnp.float32) * 0.02
    fc_bias = jax.random.normal(k_b, (NUM_CLASS,), dtype=jnp.float32) * 0.02

    out = net_forward(x, fc_weight, fc_bias)
    out = jax.block_until_ready(out)
    assert out.shape == (B, NUM_CLASS)

    # Reference with matching bf16 input cast (kernel accumulates in f32).
    feat_f32 = x.reshape(B, -1)
    ref_bf16 = (feat_f32.astype(jnp.bfloat16).astype(jnp.float32)
                @ fc_weight.astype(jnp.bfloat16).astype(jnp.float32).T) + fc_bias
    assert jnp.allclose(out, ref_bf16, atol=1e-3, rtol=1e-3)

    # Loose check against the full-f32 PyTorch-equivalent reference.
    ref_f32 = feat_f32 @ fc_weight.T + fc_bias
    assert jnp.allclose(out, ref_f32, atol=2e-2, rtol=2e-2)

    print("KERNEL_OK")
</pallas_src>

<mosaic_0001>
module attributes {stable_mosaic.version = 11 : i64} {
  func.func @_fc_kernel(%arg0: i32, %arg1: memref<8x512xbf16, #tpu.memory_space<vmem>>, %arg2: memref<128x512xbf16, #tpu.memory_space<vmem>>, %arg3: memref<1x128xf32, #tpu.memory_space<vmem>>, %arg4: memref<8x128xf32, #tpu.memory_space<vmem>>) attributes {dimension_semantics = [#tpu.dimension_semantics<parallel>], iteration_bounds = array<i64: 1>, scalar_prefetch = 0 : i64, scratch_operands = 0 : i64, tpu.core_type = #tpu.core_type<tc>, window_params = [{transform_indices = @transform_0, window_bounds = array<i64: 8, 512>}, {pipeline_mode = #tpu.pipeline_mode<synchronous>, transform_indices = @transform_1, window_bounds = array<i64: 128, 512>}, {pipeline_mode = #tpu.pipeline_mode<synchronous>, transform_indices = @transform_2, window_bounds = array<i64: 1, 128>}, {transform_indices = @transform_3, window_bounds = array<i64: 8, 128>}]} {
    %c0 = arith.constant 0 : index
    %c0_0 = arith.constant 0 : index
    %0 = vector.load %arg1[%c0, %c0_0] : memref<8x512xbf16, #tpu.memory_space<vmem>>, vector<8x512xbf16>
    %c0_1 = arith.constant 0 : index
    %c0_2 = arith.constant 0 : index
    %1 = vector.load %arg2[%c0_1, %c0_2] : memref<128x512xbf16, #tpu.memory_space<vmem>>, vector<128x512xbf16>
    %cst = arith.constant dense<0.000000e+00> : vector<8x128xf32>
    %2 = tpu.matmul %0, %1, %cst {dimension_numbers = #tpu.dot_dimension_numbers<[1], [1], [0], [0], [0, 0, 1, 0], [], []>} : vector<8x512xbf16>, vector<128x512xbf16>, vector<8x128xf32> -> vector<8x128xf32>
    %c0_3 = arith.constant 0 : index
    %c0_4 = arith.constant 0 : index
    %3 = vector.load %arg3[%c0_3, %c0_4] : memref<1x128xf32, #tpu.memory_space<vmem>>, vector<1x128xf32>
    %4 = vector.broadcast %3 : vector<1x128xf32> to vector<8x128xf32>
    %5 = arith.addf %2, %4 : vector<8x128xf32>
    %c0_5 = arith.constant 0 : index
    %c0_6 = arith.constant 0 : index
    %6 = vector.load %arg4[%c0_5, %c0_6] : memref<8x128xf32, #tpu.memory_space<vmem>>, vector<8x128xf32>
    tpu.vector_store %arg4[%c0_5, %c0_6], %5 {strides = array<i32>} : memref<8x128xf32, #tpu.memory_space<vmem>>, vector<8x128xf32>,
    return
  }
  func.func @transform_0(%arg0: i32) -> (i32, i32) {
    %c0_i32 = arith.constant 0 : i32
    %c0_i32_0 = arith.constant 0 : i32
    return %arg0, %c0_i32 : i32, i32
  }
  func.func @transform_1(%arg0: i32) -> (i32, i32) {
    %c0_i32 = arith.constant 0 : i32
    %c0_i32_0 = arith.constant 0 : i32
    %c0_i32_1 = arith.constant 0 : i32
    return %c0_i32, %c0_i32_0 : i32, i32
  }
  func.func @transform_2(%arg0: i32) -> (i32, i32) {
    %c0_i32 = arith.constant 0 : i32
    %c0_i32_0 = arith.constant 0 : i32
    %c0_i32_1 = arith.constant 0 : i32
    return %c0_i32, %c0_i32_0 : i32, i32
  }
  func.func @transform_3(%arg0: i32) -> (i32, i32) {
    %c0_i32 = arith.constant 0 : i32
    %c0_i32_0 = arith.constant 0 : i32
    return %arg0, %c0_i32 : i32, i32
  }
}

</mosaic_0001>

<llo_original>
// kernel: net_forward.1
$region0: #{net_forward.1}
  #allocation0 [shape = 'u32[]', space=smem, size = 0x4, offset = 0x4, fixed_abs, tag = 'smem constant byte address 0x4 - core index']
  #allocation1 [shape = 'u32[72,128]{1,0:T(1,128)}', space=vmem, size = 0x9000, scoped, tag = 'internal scratch']
  %s0 = inlined_call_operand.vmem [shape: bf16[8,512], index: 0, kind: input, shape index: {}]
  %s1 = inlined_call_operand.vmem [shape: bf16[128,512], index: 1, kind: input, shape index: {}]
  %s2 = inlined_call_operand.vmem [shape: f32[1,128], index: 2, kind: input, shape index: {}]
  %s3 = inlined_call_operand.hbm [shape: f32[8,128], index: 3, kind: output, shape index: {}]
  %s4 = sld [smem:[#allocation0]]
  $region22: #{net_forward.1} parent=0
    _
  %s6 = ssub.s32 1, %s4
  %s7 = scalar_select 0, %s6, %s4
  $region1: #{net_forward.1} parent=0
    #allocation2 [shape = 'u8[4096]{0}', space=vmem, size = 0x1000, scoped, tag = 'output window, operand 0, single buffered']
    #allocation3 [shape = 's32[1]{0}', space=sflag, size = 0x4, scoped, tag = 'scoped memory for net_forward.1']
    %8 = vsyncpa [#allocation3], 0
    // Predicated region
    $region2: #{net_forward.1} parent=1 // pred_check
      _
    $region3: #{net_forward.1} parent=1 // pred_check_branch
      %10 = sbr.rel (0) target = $region5
    $region4: #{net_forward.1} parent=1 // pred_region
      _
    $region5: #{net_forward.1} parent=1 // pred_fallthru
      _
    // Predicated region
    $region6: #{net_forward.1} parent=1 // pred_check
      _
    $region7: #{net_forward.1} parent=1 // pred_check_branch
      %12 = sbr.rel (0) target = $region9
    $region8: #{net_forward.1} parent=1 // pred_region
      _
    $region9: #{net_forward.1} parent=1 // pred_fallthru
      _
    // Predicated region
    $region10: #{net_forward.1} parent=1 // pred_check
      _
    $region11: #{net_forward.1} parent=1 // pred_check_branch
      %14 = sbr.rel (0) target = $region13
    $region12: #{net_forward.1} parent=1 // pred_region
      _
    $region13: #{net_forward.1} parent=1 // pred_fallthru
      _
    %v15 = vld [vmem:[%s0] sm:$0xff]
    %v16 = vld [vmem:[%s0 + $0x8] sm:$0xff]
    %v17 = vld [vmem:[%s1] sm:$0xff]
    %v18 = vld [vmem:[%s1 + $0x8] sm:$0xff]
    %v19 = vld [vmem:[%s1 + $0x10] sm:$0xff]
    %v20 = vld [vmem:[%s1 + $0x18] sm:$0xff]
    %v21 = vld [vmem:[%s1 + $0x20] sm:$0xff]
    %v22 = vld [vmem:[%s1 + $0x28] sm:$0xff]
    %v23 = vld [vmem:[%s1 + $0x30] sm:$0xff]
    %v24 = vld [vmem:[%s1 + $0x38] sm:$0xff]
    %v25 = vld [vmem:[%s1 + $0x40] sm:$0xff]
    %v26 = vld [vmem:[%s1 + $0x48] sm:$0xff]
    %v27 = vld [vmem:[%s1 + $0x50] sm:$0xff]
    %v28 = vld [vmem:[%s1 + $0x58] sm:$0xff]
    %v29 = vld [vmem:[%s1 + $0x60] sm:$0xff]
    %v30 = vld [vmem:[%s1 + $0x68] sm:$0xff]
    %v31 = vld [vmem:[%s1 + $0x70] sm:$0xff]
    %v32 = vld [vmem:[%s1 + $0x78] sm:$0xff]
    %v33 = vld [vmem:[%s1 + $0x80] sm:$0xff]
    %v34 = vld [vmem:[%s1 + $0x88] sm:$0xff]
    %v35 = vld [vmem:[%s1 + $0x90] sm:$0xff]
    %v36 = vld [vmem:[%s1 + $0x98] sm:$0xff]
    %v37 = vld [vmem:[%s1 + $0xa0] sm:$0xff]
    %v38 = vld [vmem:[%s1 + $0xa8] sm:$0xff]
    %v39 = vld [vmem:[%s1 + $0xb0] sm:$0xff]
    %v40 = vld [vmem:[%s1 + $0xb8] sm:$0xff]
    %v41 = vld [vmem:[%s1 + $0xc0] sm:$0xff]
    %v42 = vld [vmem:[%s1 + $0xc8] sm:$0xff]
    %v43 = vld [vmem:[%s1 + $0xd0] sm:$0xff]
    %v44 = vld [vmem:[%s1 + $0xd8] sm:$0xff]
    %v45 = vld [vmem:[%s1 + $0xe0] sm:$0xff]
    %v46 = vld [vmem:[%s1 + $0xe8] sm:$0xff]
    %v47 = vld [vmem:[%s1 + $0xf0] sm:$0xff]
    %v48 = vld [vmem:[%s1 + $0xf8] sm:$0xff]
    %v49 = vld [vmem:[%s2] sm:$0x1]
    %v51 = vperm.slane %v49, 0
    %v55 = vunpack.c.l.b16 %v15
    %v56 = vunpack.c.h.b16 %v15
    %v57 = vunpack.c.l.b16 %v16
    %v58 = vunpack.c.h.b16 %v16
    %v59 = vpack.c.b16 %v55, %v55
    %v60 = vpack.c.b16 %v56, %v56
    %v61 = vpack.c.b16 %v57, %v57
    %v62 = vpack.c.b16 %v58, %v58
    %v99 = vunpack.c.l.b16 %v17
    %v100 = vunpack.c.h.b16 %v17
    %v101 = vunpack.c.l.b16 %v18
    %v102 = vunpack.c.h.b16 %v18
    %v103 = vunpack.c.l.b16 %v19
    %v104 = vunpack.c.h.b16 %v19
    %v105 = vunpack.c.l.b16 %v20
    %v106 = vunpack.c.h.b16 %v20
    %v107 = vunpack.c.l.b16 %v21
    %v108 = vunpack.c.h.b16 %v21
    %v109 = vunpack.c.l.b16 %v22
    %v110 = vunpack.c.h.b16 %v22
    %v111 = vunpack.c.l.b16 %v23
    %v112 = vunpack.c.h.b16 %v23
    %v113 = vunpack.c.l.b16 %v24
    %v114 = vunpack.c.h.b16 %v24
    %v115 = vunpack.c.l.b16 %v25
    %v116 = vunpack.c.h.b16 %v25
    %v117 = vunpack.c.l.b16 %v26
    %v118 = vunpack.c.h.b16 %v26
    %v119 = vunpack.c.l.b16 %v27
    %v120 = vunpack.c.h.b16 %v27
    %v121 = vunpack.c.l.b16 %v28
    %v122 = vunpack.c.h.b16 %v28
    %v123 = vunpack.c.l.b16 %v29
    %v124 = vunpack.c.h.b16 %v29
    %v125 = vunpack.c.l.b16 %v30
    %v126 = vunpack.c.h.b16 %v30
    %v127 = vunpack.c.l.b16 %v31
    %v128 = vunpack.c.h.b16 %v31
    %v129 = vunpack.c.l.b16 %v32
    %v130 = vunpack.c.h.b16 %v32
    %v131 = vunpack.c.l.b16 %v33
    %v132 = vunpack.c.h.b16 %v33
    %v133 = vunpack.c.l.b16 %v34
    %v134 = vunpack.c.h.b16 %v34
    %v135 = vunpack.c.l.b16 %v35
    %v136 = vunpack.c.h.b16 %v35
    %v137 = vunpack.c.l.b16 %v36
    %v138 = vunpack.c.h.b16 %v36
    %v139 = vunpack.c.l.b16 %v37
    %v140 = vunpack.c.h.b16 %v37
    %v141 = vunpack.c.l.b16 %v38
    %v142 = vunpack.c.h.b16 %v38
    %v143 = vunpack.c.l.b16 %v39
    %v144 = vunpack.c.h.b16 %v39
    %v145 = vunpack.c.l.b16 %v40
    %v146 = vunpack.c.h.b16 %v40
    %v147 = vunpack.c.l.b16 %v41
    %v148 = vunpack.c.h.b16 %v41
    %v149 = vunpack.c.l.b16 %v42
    %v150 = vunpack.c.h.b16 %v42
    %v151 = vunpack.c.l.b16 %v43
    %v152 = vunpack.c.h.b16 %v43
    %v153 = vunpack.c.l.b16 %v44
    %v154 = vunpack.c.h.b16 %v44
    %v155 = vunpack.c.l.b16 %v45
    %v156 = vunpack.c.h.b16 %v45
    %v157 = vunpack.c.l.b16 %v46
    %v158 = vunpack.c.h.b16 %v46
    %v159 = vunpack.c.l.b16 %v47
    %v160 = vunpack.c.h.b16 %v47
    %v161 = vunpack.c.l.b16 %v48
    %v162 = vunpack.c.h.b16 %v48
    %v163 = vpack.c.b16 %v103, %v99
    %v164 = vpack.c.b16 %v104, %v100
    %v165 = vpack.c.b16 %v105, %v101
    %v166 = vpack.c.b16 %v106, %v102
    %v167 = vpack.c.b16 %v111, %v107
    %v168 = vpack.c.b16 %v112, %v108
    %v169 = vpack.c.b16 %v113, %v109
    %v170 = vpack.c.b16 %v114, %v110
    %v171 = vpack.c.b16 %v119, %v115
    %v172 = vpack.c.b16 %v120, %v116
    %v173 = vpack.c.b16 %v121, %v117
    %v174 = vpack.c.b16 %v122, %v118
    %v175 = vpack.c.b16 %v127, %v123
    %v176 = vpack.c.b16 %v128, %v124
    %v177 = vpack.c.b16 %v129, %v125
    %v178 = vpack.c.b16 %v130, %v126
    %v179 = vpack.c.b16 %v135, %v131
    %v180 = vpack.c.b16 %v136, %v132
    %v181 = vpack.c.b16 %v137, %v133
    %v182 = vpack.c.b16 %v138, %v134
    %v183 = vpack.c.b16 %v143, %v139
    %v184 = vpack.c.b16 %v144, %v140
    %v185 = vpack.c.b16 %v145, %v141
    %v186 = vpack.c.b16 %v146, %v142
    %v187 = vpack.c.b16 %v151, %v147
    %v188 = vpack.c.b16 %v152, %v148
    %v189 = vpack.c.b16 %v153, %v149
    %v190 = vpack.c.b16 %v154, %v150
    %v191 = vpack.c.b16 %v159, %v155
    %v192 = vpack.c.b16 %v160, %v156
    %v193 = vpack.c.b16 %v161, %v157
    %v194 = vpack.c.b16 %v162, %v158
    %227 = vmatpush.bf16.xpose.msra.mxu0 %v191
    %228 = vmatpush.bf16.xpose.msra.mxu0 %v187
    %229 = vmatpush.bf16.xpose.msra.mxu0 %v183
    %230 = vmatpush.bf16.xpose.msra.mxu0 %v179
    %231 = vmatpush.bf16.xpose.msra.mxu0 %v175
    %232 = vmatpush.bf16.xpose.msra.mxu0 %v171
    %233 = vmatpush.bf16.xpose.msra.mxu0 %v167
    %234 = vmatpush.bf16.xpose.msra.mxu0 %v163
    %235 = vmatmul.bf16.gmra.mxu0 %v59
    %v236 = vpop.f32.mrf.mxu0
    %v237 = vadd.f32 %v51, %v236
    %v238 = vpop.f32.mrf.mxu0
    %239 = vdwg.mxu0
    %240 = vmatpush.bf16.xpose.msra.mxu0 %v192
    %241 = vmatpush.bf16.xpose.msra.mxu0 %v188
    %242 = vmatpush.bf16.xpose.msra.mxu0 %v184
    %243 = vmatpush.bf16.xpose.msra.mxu0 %v180
    %244 = vmatpush.bf16.xpose.msra.mxu0 %v176
    %245 = vmatpush.bf16.xpose.msra.mxu0 %v172
    %246 = vmatpush.bf16.xpose.msra.mxu0 %v168
    %247 = vmatpush.bf16.xpose.msra.mxu0 %v164
    %248 = vmatmul.bf16.gmra.mxu0 %v60
    %v249 = vpop.f32.mrf.mxu0
    %v250 = vadd.f32 %v237, %v249
    %v251 = vpop.f32.mrf.mxu0
    %252 = vdwg.mxu0
    %253 = vmatpush.bf16.xpose.msra.mxu0 %v193
    %254 = vmatpush.bf16.xpose.msra.mxu0 %v189
    %255 = vmatpush.bf16.xpose.msra.mxu0 %v185
    %256 = vmatpush.bf16.xpose.msra.mxu0 %v181
    %257 = vmatpush.bf16.xpose.msra.mxu0 %v177
    %258 = vmatpush.bf16.xpose.msra.mxu0 %v173
    %259 = vmatpush.bf16.xpose.msra.mxu0 %v169
    %260 = vmatpush.bf16.xpose.msra.mxu0 %v165
    %261 = vmatmul.bf16.gmra.mxu0 %v61
    %v262 = vpop.f32.mrf.mxu0
    %v263 = vadd.f32 %v250, %v262
    %v264 = vpop.f32.mrf.mxu0
    %265 = vdwg.mxu0
    %266 = vmatpush.bf16.xpose.msra.mxu0 %v194
    %267 = vmatpush.bf16.xpose.msra.mxu0 %v190
    %268 = vmatpush.bf16.xpose.msra.mxu0 %v186
    %269 = vmatpush.bf16.xpose.msra.mxu0 %v182
    %270 = vmatpush.bf16.xpose.msra.mxu0 %v178
    %271 = vmatpush.bf16.xpose.msra.mxu0 %v174
    %272 = vmatpush.bf16.xpose.msra.mxu0 %v170
    %273 = vmatpush.bf16.xpose.msra.mxu0 %v166
    %274 = vmatmul.bf16.gmra.mxu0 %v62
    %v275 = vpop.f32.mrf.mxu0
    %v276 = vadd.f32 %v263, %v275
    %v277 = vpop.f32.mrf.mxu0
    %278 = vdwg.mxu0
    %279 = vst [vmem:[#allocation2] sm:$0xff] %v276
    // Predicated region
    $region14: #{net_forward.1} parent=1 // pred_check
      _
    $region15: #{net_forward.1} parent=1 // pred_check_branch
      %281 = sbr.rel (0) target = $region17
    $region16: #{net_forward.1} parent=1 // pred_region
      %283 = vsyncadd [#allocation3], 0
      %s285 = sshll.u32 [#allocation2], 4
      %s286 = int_to_ptr.vmem [resolvable:$true] %s285
      %s287 = sshll.u32 %s3, 4
      %s288 = int_to_ptr.hbm [resolvable:$true] %s287
      %290 = dma.vmem_to_hbm [thread:$0]  %s286, 128, %s288, [#allocation3]
    $region17: #{net_forward.1} parent=1 // pred_fallthru
      _
    // Predicated region
    $region18: #{net_forward.1} parent=1 // pred_check
      _
    $region19: #{net_forward.1} parent=1 // pred_check_branch
      %292 = sbr.rel (0) target = $region21
    $region20: #{net_forward.1} parent=1 // pred_region
      %294 = dma.done [#allocation3], 128
    $region21: #{net_forward.1} parent=1 // pred_fallthru
      _
    %295 = vsyncpa [#allocation3], 1

</llo_original>
